<compile_context>
chip_gen: v7x
topology: tpu7x:2x2x1
jax: 0.10.0
libtpu: 0.0.40
codegen_flags: <defaults>
</compile_context>

<pallas_src>
import functools

import numpy as np
import jax
import jax.numpy as jnp
from jax.experimental import pallas as pl
from jax.experimental.pallas import tpu as pltpu

LRELU_SLOPE = 0.1                     # slope inside HiFi-GAN blocks / upsamplers
_VMEM_LIMIT = 32 * 1024 * 1024        # safe on v5e/v6e/v7x
_TILE_BUDGET_BYTES = 4 * 1024 * 1024  # per-tile activation budget (keeps 2x buffers small)
_MAX_TT = 2048


# ---------------------------------------------------------------------------
# helpers
# ---------------------------------------------------------------------------
def _choose_time_tile(t_out, bytes_per_col):
    """Largest 128-multiple tile <= t_out that fits the per-tile budget."""
    if t_out <= 128:
        return t_out
    tt = min((t_out // 128) * 128, _MAX_TT)
    while tt > 128 and tt * bytes_per_col > _TILE_BUDGET_BYTES:
        tt -= 128
    return tt


def _build_windows(x, pad_left, halo, tt, nt, dtype):
    """(B, C, T) -> (B, nt, C, tt + halo) overlapping, zero-padded time windows.

    Window t holds padded positions [t*tt, t*tt + tt + halo) where
    padded[i] == x[i - pad_left] (zeros outside [0, T)).  Built purely from
    pad/reshape/slice/concat so XLA emits a single fused copy pass.
    """
    B, C, T = x.shape
    n_extra = -(-halo // tt) if halo > 0 else 0
    L_pad = max((nt + n_extra) * tt, T + pad_left)
    xp = jnp.pad(x.astype(dtype), ((0, 0), (0, 0), (pad_left, L_pad - T - pad_left)))
    body = xp[:, :, : nt * tt].reshape(B, C, nt, tt)
    chunks = [body]
    rem, m = halo, 1
    while rem > 0:
        take = min(tt, rem)
        nxt = xp[:, :, m * tt: m * tt + nt * tt].reshape(B, C, nt, tt)[:, :, :, :take]
        chunks.append(nxt)
        rem -= take
        m += 1
    win = jnp.concatenate(chunks, axis=-1) if len(chunks) > 1 else body
    return jnp.transpose(win, (0, 2, 1, 3))  # (B, nt, C, tt + halo)


def _is_f32(dtype):
    return np.dtype(dtype) == np.float32


# ---------------------------------------------------------------------------
# generic time-tiled Conv1d (stride 1), leaky-relu / tanh fused, im2col on MXU
# ---------------------------------------------------------------------------
def _conv1d_kernel(x_ref, w_ref, b_ref, o_ref, *, K, dilation, tt, leaky_in,
                   tanh_out, precision):
    x = x_ref[...]                                   # (C_in, tt + halo)
    if leaky_in is not None:
        slope = jnp.asarray(leaky_in, x.dtype)       # leaky(0)=0 -> pads stay 0
        x = jnp.where(x >= 0, x, slope * x)
    if K > 1:
        cols = jnp.concatenate(
            [x[:, j * dilation: j * dilation + tt] for j in range(K)], axis=0)
    else:
        cols = x[:, :tt]
    acc = jnp.dot(w_ref[...], cols, preferred_element_type=jnp.float32,
                  precision=precision)               # (C_out, tt), f32 accum
    acc = acc + b_ref[...]
    if tanh_out:
        acc = jnp.tanh(acc)
    o_ref[...] = acc.astype(o_ref.dtype)


def pallas_conv1d(x, w, b, *, pad_left, pad_right, dilation=1, leaky_in=None,
                  tanh_out=False, compute_dtype=jnp.bfloat16, out_dtype=None):
    """PyTorch-semantics Conv1d (stride=1), zero padding pad_left/pad_right.

    x: (B, C_in, T)  w: (C_out, C_in, K)  b: (C_out,)  ->  (B, C_out, T_out)
    """
    B, C_in, T = x.shape
    C_out, _, K = w.shape
    out_dtype = out_dtype if out_dtype is not None else x.dtype
    halo = (K - 1) * dilation
    T_out = T + pad_left + pad_right - halo
    assert T_out > 0

    itemsize = np.dtype(compute_dtype).itemsize
    bytes_per_col = (K * C_in + C_in + C_out) * itemsize + 8 * C_out
    tt = _choose_time_tile(T_out, bytes_per_col)
    nt = pl.cdiv(T_out, tt)
    W = tt + halo

    x_win = _build_windows(x, pad_left, halo, tt, nt, compute_dtype)
    w_mat = jnp.transpose(w, (0, 2, 1)).reshape(C_out, K * C_in).astype(compute_dtype)
    b_col = b.reshape(C_out, 1).astype(jnp.float32)
    precision = jax.lax.Precision.HIGHEST if _is_f32(compute_dtype) else None

    kernel = functools.partial(_conv1d_kernel, K=K, dilation=dilation, tt=tt,
                               leaky_in=leaky_in, tanh_out=tanh_out,
                               precision=precision)
    return pl.pallas_call(
        kernel,
        out_shape=jax.ShapeDtypeStruct((B, C_out, T_out), out_dtype),
        grid_spec=pltpu.PrefetchScalarGridSpec(
            num_scalar_prefetch=0,
            grid=(B, nt),
            in_specs=[
                pl.BlockSpec((None, None, C_in, W), lambda bi, ti: (bi, ti, 0, 0)),
                # weights / bias: constant index_map -> resident across time tiles
                pl.BlockSpec((C_out, K * C_in), lambda bi, ti: (0, 0)),
                pl.BlockSpec((C_out, 1), lambda bi, ti: (0, 0)),
            ],
            out_specs=pl.BlockSpec((None, C_out, tt), lambda bi, ti: (bi, 0, ti)),
        ),
        compiler_params=pltpu.CompilerParams(
            dimension_semantics=("parallel", "parallel"),
            vmem_limit_bytes=_VMEM_LIMIT),
    )(x_win, w_mat, b_col)


# ---------------------------------------------------------------------------
# ConvTranspose1d via polyphase decomposition (no zero-stuffing)
# ---------------------------------------------------------------------------
def pallas_conv_transpose1d(x, w, b, *, stride, padding, leaky_in=None,
                            compute_dtype=jnp.bfloat16, out_dtype=None):
    """PyTorch-semantics ConvTranspose1d (output_padding=0, dilation=1).

    x: (B, C_in, T)  w: (C_in, C_out, K)  b: (C_out,)
    One stride-1 conv with s*C_out phase channels and ceil(K/s) taps, then the
    phases are interleaved in the wrapper.
    """
    B, C_in, T = x.shape
    _, C_out, K = w.shape
    s, p = stride, padding
    out_dtype = out_dtype if out_dtype is not None else x.dtype
    T_out = (T - 1) * s - 2 * p + K
    Km = -(-K // s)                                   # taps per sub-filter

    # Wc[phi*C_out + co, ci, t'] = w[ci, co, phi + s*(Km-1-t')]   (0 if >= K)
    w_pad = jnp.pad(w, ((0, 0), (0, 0), (0, s * Km - K)))
    w4 = jnp.flip(w_pad.reshape(C_in, C_out, Km, s), axis=2)      # [ci, co, t', phi]
    w_comb = jnp.transpose(w4, (3, 1, 0, 2)).reshape(s * C_out, C_in, Km)
    b_comb = jnp.tile(b, s)

    U = -(-(T_out + p) // s)                          # phase-domain output length
    R = pallas_conv1d(x, w_comb, b_comb, pad_left=Km - 1, pad_right=U - T,
                      dilation=1, leaky_in=leaky_in,
                      compute_dtype=compute_dtype, out_dtype=compute_dtype)
    # interleave phases: Z[b, co, u*s + phi] = R[b, phi*C_out + co, u]
    Z = jnp.transpose(R.reshape(B, s, C_out, U), (0, 2, 3, 1)).reshape(B, C_out, U * s)
    return Z[:, :, p: p + T_out].astype(out_dtype)    # y[j] = Z[j + p]


# ---------------------------------------------------------------------------
# fused ResBlock stage: mean_j ResBlock1_j(x), one pallas_call per stage
# ---------------------------------------------------------------------------
def _mask_time(v, start_pos, t_total):
    """Zero columns whose global time index (start_pos + i) is outside [0, T)."""
    L = v.shape[1]
    pos = start_pos + jax.lax.broadcasted_iota(jnp.int32, (1, L), 1)
    ok = jnp.logical_and(pos >= 0, pos < t_total)
    return jnp.where(ok, v, jnp.zeros_like(v))


def _stage_kernel(x_ref, *refs, structure, tt, s_max, t_total, slope, precision):
    o_ref = refs[-1]
    wb = refs[:-1]
    t_start = pl.program_id(1) * tt
    x = x_ref[...]                                    # (C, tt + 2*s_max)
    cdt = x.dtype
    C = x.shape[0]
    slope_c = jnp.asarray(slope, cdt)
    acc = jnp.zeros((C, tt), jnp.float32)
    idx = 0
    for k, dils in structure:
        s_j = sum(((k * d - d) // 2) + ((k - 1) // 2) for d in dils)
        margin = s_max - s_j
        h = x[:, margin: margin + tt + 2 * s_j] if margin > 0 else x
        left = s_j                                    # col i of h <-> t_start - left + i
        for d in dils:
            w1, b1 = wb[idx][...], wb[idx + 1][...]
            w2, b2 = wb[idx + 2][...], wb[idx + 3][...]
            idx += 4
            pad1 = (k * d - d) // 2
            pad2 = (k - 1) // 2
            Lh = h.shape[1]
            # leaky_relu -> dilated conv1 (valid conv over the halo'd slab)
            a = jnp.where(h >= 0, h, slope_c * h)
            L1 = Lh - (k - 1) * d
            col1 = jnp.concatenate([a[:, j * d: j * d + L1] for j in range(k)], axis=0)
            y1 = jnp.dot(w1, col1, preferred_element_type=jnp.float32,
                         precision=precision) + b1
            left -= pad1
            # PyTorch zero-pads conv1's *length-T* output before conv2 -> zero
            # everything outside [0, T) so tile boundaries stay exact.
            y1 = _mask_time(y1, t_start - left, t_total)
            y1 = jnp.where(y1 >= 0, y1, slope * y1).astype(cdt)
            # conv2 (dilation 1, valid) + residual add (f32)
            L2 = L1 - (k - 1)
            col2 = jnp.concatenate([y1[:, j: j + L2] for j in range(k)], axis=0)
            y2 = jnp.dot(w2, col2, preferred_element_type=jnp.float32,
                         precision=precision) + b2
            res = h[:, pad1 + pad2: pad1 + pad2 + L2].astype(jnp.float32)
            left -= pad2
            h = _mask_time(y2 + res, t_start - left, t_total).astype(cdt)
        acc = acc + h.astype(jnp.float32)             # h now covers exactly tt cols
    o_ref[...] = (acc * (1.0 / len(structure))).astype(o_ref.dtype)


def pallas_resblock_stage(x, stage_params, kernel_sizes, dilation_sizes, *,
                          compute_dtype=jnp.bfloat16, out_dtype=None,
                          slope=LRELU_SLOPE):
    """x -> mean_j ResBlock1_j(x), all convs/residuals fused in one kernel."""
    B, C, T = x.shape
    out_dtype = out_dtype if out_dtype is not None else x.dtype
    structure = tuple((int(k), tuple(int(d) for d in dils))
                      for k, dils in zip(kernel_sizes, dilation_sizes))
    s_list = [sum(((k * d - d) // 2) + ((k - 1) // 2) for d in dils)
              for k, dils in structure]
    s_max = max(s_list)

    itemsize = np.dtype(compute_dtype).itemsize
    bytes_per_col = (max(kernel_sizes) + 3) * C * itemsize + 12 * C
    tt = _choose_time_tile(T, bytes_per_col)
    nt = pl.cdiv(T, tt)
    W = tt + 2 * s_max
    x_win = _build_windows(x, s_max, 2 * s_max, tt, nt, compute_dtype)

    wb_arrays = []
    in_specs = [pl.BlockSpec((None, None, C, W), lambda bi, ti: (bi, ti, 0, 0))]
    for (k, dils), rb in zip(structure, stage_params):
        for di, _d in enumerate(dils):
            for conv_key in ("convs1", "convs2"):
                cw = rb[conv_key][di]["w"]            # (C, C, k)
                cb = rb[conv_key][di]["b"]            # (C,)
                wm = jnp.transpose(cw, (0, 2, 1)).reshape(C, k * C).astype(compute_dtype)
                bc = cb.reshape(C, 1).astype(jnp.float32)
                wb_arrays += [wm, bc]
                in_specs += [pl.BlockSpec((C, k * C), lambda bi, ti: (0, 0)),
                             pl.BlockSpec((C, 1), lambda bi, ti: (0, 0))]

    precision = jax.lax.Precision.HIGHEST if _is_f32(compute_dtype) else None
    kernel = functools.partial(_stage_kernel, structure=structure, tt=tt,
                               s_max=s_max, t_total=T, slope=slope,
                               precision=precision)
    return pl.pallas_call(
        kernel,
        out_shape=jax.ShapeDtypeStruct((B, C, T), out_dtype),
        grid_spec=pltpu.PrefetchScalarGridSpec(
            num_scalar_prefetch=0,
            grid=(B, nt),
            in_specs=in_specs,
            out_specs=pl.BlockSpec((None, C, tt), lambda bi, ti: (bi, 0, ti)),
        ),
        compiler_params=pltpu.CompilerParams(
            dimension_semantics=("parallel", "parallel"),
            vmem_limit_bytes=_VMEM_LIMIT),
    )(x_win, *wb_arrays)


# ---------------------------------------------------------------------------
# parameters + forward (mirrors CoreHifiGan / sann.ResBlock1)
# ---------------------------------------------------------------------------
def init_params(key, cfg):
    keys = iter(jax.random.split(key, 512))

    def conv_init(c_out, c_in, k):
        std = (c_in * k) ** -0.5
        return dict(w=std * jax.random.normal(next(keys), (c_out, c_in, k), jnp.float32),
                    b=0.1 * jax.random.normal(next(keys), (c_out,), jnp.float32))

    def convT_init(c_in, c_out, k):
        std = (c_in * k) ** -0.5
        return dict(w=std * jax.random.normal(next(keys), (c_in, c_out, k), jnp.float32),
                    b=0.1 * jax.random.normal(next(keys), (c_out,), jnp.float32))

    C0 = cfg["upsample_initial_channel"]
    params = {"conv_pre": conv_init(C0, cfg["imput_dim"], 7), "ups": [], "resblocks": []}
    ch = C0
    for i, (u, k) in enumerate(zip(cfg["upsample_rates"], cfg["upsample_kernel_sizes"])):
        cin = C0 // (2 ** i)
        cout = C0 // (2 ** (i + 1))
        params["ups"].append(convT_init(cin, cout, k))
        ch = cout
        for rk, dils in zip(cfg["resblock_kernel_sizes"], cfg["resblock_dilation_sizes"]):
            rb = dict(convs1=[], convs2=[])
            for _d in dils:
                rb["convs1"].append(conv_init(ch, ch, rk))
                rb["convs2"].append(conv_init(ch, ch, rk))
            params["resblocks"].append(rb)
    out_ch = (cfg["iSTFTNet_n_fft"] + 2) if cfg["iSTFTNetout"] else 1
    params["conv_post"] = conv_init(out_ch, ch, 7)
    return params


def core_hifigan_forward(params, x, cfg, compute_dtype=jnp.bfloat16):
    """x: (B, imput_dim, T) float32 -> (signal, aux) like CoreHifiGan.forward."""
    num_kernels = len(cfg["resblock_kernel_sizes"])
    cd = compute_dtype

    h = pallas_conv1d(x, params["conv_pre"]["w"], params["conv_pre"]["b"],
                      pad_left=3, pad_right=3, compute_dtype=cd, out_dtype=cd)
    for i, (u, k) in enumerate(zip(cfg["upsample_rates"], cfg["upsample_kernel_sizes"])):
        # leaky_relu(x, 0.1) fused into the (polyphase) transposed conv
        h = pallas_conv_transpose1d(h, params["ups"][i]["w"], params["ups"][i]["b"],
                                    stride=u, padding=(k - u) // 2,
                                    leaky_in=LRELU_SLOPE,
                                    compute_dtype=cd, out_dtype=cd)
        stage = params["resblocks"][i * num_kernels:(i + 1) * num_kernels]
        h = pallas_resblock_stage(h, stage, cfg["resblock_kernel_sizes"],
                                  cfg["resblock_dilation_sizes"],
                                  compute_dtype=cd, out_dtype=cd)

    # F.leaky_relu (slope 0.01) + ReflectionPad1d((1, 0)) + conv_post + tanh
    # (leaky/tanh fused into the conv kernel; reflection pad is a tiny concat)
    h = jnp.concatenate([h[:, :, 1:2], h], axis=2)
    out = pallas_conv1d(h, params["conv_post"]["w"], params["conv_post"]["b"],
                        pad_left=3, pad_right=3, leaky_in=0.01, tanh_out=True,
                        compute_dtype=cd, out_dtype=jnp.float32)

    if cfg["iSTFTNetout"]:
        n = cfg["iSTFTNet_n_fft"]
        return jnp.exp(out[:, :n // 2 + 1, :]), jnp.sin(out[:, n // 2 + 1:, :])
    # torch.empty(1) placeholder -> deterministic zeros
    return out, jnp.zeros((1,), jnp.float32)


# ---------------------------------------------------------------------------
# pure-JAX (lax) reference, used only for correctness checking
# ---------------------------------------------------------------------------
def _ref_leaky(v, slope):
    return jnp.where(v >= 0, v, slope * v)


def _ref_conv1d(x, w, b, padding, dilation=1):
    y = jax.lax.conv_general_dilated(
        x, w, window_strides=(1,), padding=[(padding, padding)],
        rhs_dilation=(dilation,), dimension_numbers=("NCH", "OIH", "NCH"),
        precision=jax.lax.Precision.HIGHEST)
    return y + b[None, :, None]


def _ref_conv_transpose1d(x, w, b, stride, padding):
    K = w.shape[2]
    w_conv = jnp.flip(jnp.transpose(w, (1, 0, 2)), axis=2)
    y = jax.lax.conv_general_dilated(
        x, w_conv, window_strides=(1,),
        padding=[(K - 1 - padding, K - 1 - padding)],
        lhs_dilation=(stride,), dimension_numbers=("NCH", "OIH", "NCH"),
        precision=jax.lax.Precision.HIGHEST)
    return y + b[None, :, None]


def ref_forward(params, x, cfg):
    num_kernels = len(cfg["resblock_kernel_sizes"])
    h = _ref_conv1d(x, params["conv_pre"]["w"], params["conv_pre"]["b"], 3)
    for i, (u, k) in enumerate(zip(cfg["upsample_rates"], cfg["upsample_kernel_sizes"])):
        h = _ref_leaky(h, LRELU_SLOPE)
        h = _ref_conv_transpose1d(h, params["ups"][i]["w"], params["ups"][i]["b"],
                                  u, (k - u) // 2)
        xs = jnp.zeros_like(h)
        for j in range(num_kernels):
            rb = params["resblocks"][i * num_kernels + j]
            rk = cfg["resblock_kernel_sizes"][j]
            dils = cfg["resblock_dilation_sizes"][j]
            xt = h
            for di, d in enumerate(dils):
                a = _ref_leaky(xt, LRELU_SLOPE)
                a = _ref_conv1d(a, rb["convs1"][di]["w"], rb["convs1"][di]["b"],
                                (rk * d - d) // 2, d)
                a = _ref_leaky(a, LRELU_SLOPE)
                a = _ref_conv1d(a, rb["convs2"][di]["w"], rb["convs2"][di]["b"],
                                (rk - 1) // 2, 1)
                xt = a + xt
            xs = xs + xt
        h = xs / num_kernels
    h = _ref_leaky(h, 0.01)
    h = jnp.concatenate([h[:, :, 1:2], h], axis=2)
    h = jnp.tanh(_ref_conv1d(h, params["conv_post"]["w"], params["conv_post"]["b"], 3))
    if cfg["iSTFTNetout"]:
        n = cfg["iSTFTNet_n_fft"]
        return jnp.exp(h[:, :n // 2 + 1, :]), jnp.sin(h[:, n // 2 + 1:, :])
    return h, jnp.zeros((1,), jnp.float32)


def _assert_close(a, b, name, rel):
    scale = float(jnp.max(jnp.abs(b))) + 1e-6
    err = float(jnp.max(jnp.abs(a.astype(jnp.float32) - b.astype(jnp.float32))))
    assert err <= rel * scale, f"{name}: max err {err:.3e} vs scale {scale:.3e}"


if __name__ == "__main__":
    # Small but structurally faithful CoreHifiGan configuration.
    cfg = dict(
        upsample_rates=[2, 2],
        upsample_kernel_sizes=[4, 4],
        imput_dim=16,
        upsample_initial_channel=32,
        resblock_kernel_sizes=[3, 5],
        resblock_dilation_sizes=[[1, 3], [1, 3]],
        iSTFTNetout=False,
        iSTFTNet_n_fft=16,
    )
    key = jax.random.PRNGKey(0)
    kp, kx, kx2 = jax.random.split(key, 3)
    params = init_params(kp, cfg)

    B, T = 2, 8
    x = jax.random.normal(kx, (B, cfg["imput_dim"], T), jnp.float32)

    # --- correctness: float32 Pallas path vs. pure-JAX (lax) reference -------
    sig_f32, _ = core_hifigan_forward(params, x, cfg, compute_dtype=jnp.float32)
    sig_ref, _ = ref_forward(params, x, cfg)
    jax.block_until_ready(sig_f32)
    assert sig_f32.shape == (B, 1, 33), sig_f32.shape   # 8 -> 16 -> 32 -> +refl pad
    _assert_close(sig_f32, sig_ref, "signal (f32)", rel=0.08)

    # longer input: exercises multi-tile time grid (nt > 1) + ragged last tile
    x2 = jax.random.normal(kx2, (1, cfg["imput_dim"], 80), jnp.float32)
    sig2_f32, _ = core_hifigan_forward(params, x2, cfg, compute_dtype=jnp.float32)
    sig2_ref, _ = ref_forward(params, x2, cfg)
    assert sig2_f32.shape == (1, 1, 321), sig2_f32.shape
    _assert_close(sig2_f32, sig2_ref, "signal long (f32)", rel=0.08)

    # iSTFTNet output branch
    cfg_i = dict(cfg, iSTFTNetout=True)
    params_i = init_params(kp, cfg_i)
    spec, phase = core_hifigan_forward(params_i, x, cfg_i, compute_dtype=jnp.float32)
    spec_r, phase_r = ref_forward(params_i, x, cfg_i)
    assert spec.shape == spec_r.shape and phase.shape == phase_r.shape
    _assert_close(spec, spec_r, "spec (f32)", rel=0.08)
    _assert_close(phase, phase_r, "phase (f32)", rel=0.08)

    # --- performance path: bf16 on the MXU, f32 accumulation -----------------
    sig_bf16, aux = core_hifigan_forward(params, x, cfg, compute_dtype=jnp.bfloat16)
    jax.block_until_ready(sig_bf16)
    jax.block_until_ready(aux)
    assert sig_bf16.shape == (B, 1, 33)
    assert bool(jnp.all(jnp.isfinite(sig_bf16)))
    _assert_close(sig_bf16, sig_ref, "signal (bf16)", rel=0.25)

    print("KERNEL_OK")
</pallas_src>

<mosaic_0001>
module attributes {stable_mosaic.version = 11 : i64} {
  func.func @_conv1d_kernel(%arg0: i32, %arg1: i32, %arg2: memref<1x1x16x14xf32, #tpu.memory_space<vmem>>, %arg3: memref<32x112xf32, #tpu.memory_space<vmem>>, %arg4: memref<32x1xf32, #tpu.memory_space<vmem>>, %arg5: memref<1x32x8xf32, #tpu.memory_space<vmem>>) attributes {dimension_semantics = [#tpu.dimension_semantics<parallel>, #tpu.dimension_semantics<parallel>], iteration_bounds = array<i64: 2, 1>, scalar_prefetch = 0 : i64, scratch_operands = 0 : i64, tpu.core_type = #tpu.core_type<tc>, window_params = [{transform_indices = @transform_0, window_bounds = array<i64: 1, 1, 16, 14>}, {pipeline_mode = #tpu.pipeline_mode<synchronous>, transform_indices = @transform_1, window_bounds = array<i64: 32, 112>}, {pipeline_mode = #tpu.pipeline_mode<synchronous>, transform_indices = @transform_2, window_bounds = array<i64: 32, 1>}, {transform_indices = @transform_3, window_bounds = array<i64: 1, 32, 8>}]} {
    %c0 = arith.constant 0 : index
    %c0_0 = arith.constant 0 : index
    %c0_1 = arith.constant 0 : index
    %c0_2 = arith.constant 0 : index
    %0 = vector.load %arg2[%c0, %c0_0, %c0_1, %c0_2] : memref<1x1x16x14xf32, #tpu.memory_space<vmem>>, vector<1x1x16x14xf32>
    %1 = vector.shape_cast %0 : vector<1x1x16x14xf32> to vector<16x14xf32>
    %2 = vector.extract_strided_slice %1 {offsets = [0, 0], sizes = [16, 8], strides = [1, 1]} : vector<16x14xf32> to vector<16x8xf32>
    %3 = vector.extract_strided_slice %1 {offsets = [0, 1], sizes = [16, 8], strides = [1, 1]} : vector<16x14xf32> to vector<16x8xf32>
    %4 = vector.extract_strided_slice %1 {offsets = [0, 2], sizes = [16, 8], strides = [1, 1]} : vector<16x14xf32> to vector<16x8xf32>
    %5 = vector.extract_strided_slice %1 {offsets = [0, 3], sizes = [16, 8], strides = [1, 1]} : vector<16x14xf32> to vector<16x8xf32>
    %6 = vector.extract_strided_slice %1 {offsets = [0, 4], sizes = [16, 8], strides = [1, 1]} : vector<16x14xf32> to vector<16x8xf32>
    %7 = vector.extract_strided_slice %1 {offsets = [0, 5], sizes = [16, 8], strides = [1, 1]} : vector<16x14xf32> to vector<16x8xf32>
    %8 = vector.extract_strided_slice %1 {offsets = [0, 6], sizes = [16, 8], strides = [1, 1]} : vector<16x14xf32> to vector<16x8xf32>
    %9 = tpu.concatenate %2, %3, %4, %5, %6, %7, %8 in 0 : vector<16x8xf32>, vector<16x8xf32>, vector<16x8xf32>, vector<16x8xf32>, vector<16x8xf32>, vector<16x8xf32>, vector<16x8xf32> -> vector<112x8xf32>
    %c0_3 = arith.constant 0 : index
    %c0_4 = arith.constant 0 : index
    %10 = vector.load %arg3[%c0_3, %c0_4] : memref<32x112xf32, #tpu.memory_space<vmem>>, vector<32x112xf32>
    %cst = arith.constant dense<0.000000e+00> : vector<32x8xf32>
    %11 = tpu.matmul %10, %9, %cst {dimension_numbers = #tpu.dot_dimension_numbers<[1], [0], [0], [1], [0, 0, 1, 1], [], []>, precision = #tpu.contract_precision<fp32>} : vector<32x112xf32>, vector<112x8xf32>, vector<32x8xf32> -> vector<32x8xf32>
    %c0_5 = arith.constant 0 : index
    %c0_6 = arith.constant 0 : index
    %12 = vector.load %arg4[%c0_5, %c0_6] : memref<32x1xf32, #tpu.memory_space<vmem>>, vector<32x1xf32>
    %13 = vector.broadcast %12 : vector<32x1xf32> to vector<32x8xf32>
    %14 = arith.addf %11, %13 : vector<32x8xf32>
    %c0_7 = arith.constant 0 : index
    %c0_8 = arith.constant 0 : index
    %c0_9 = arith.constant 0 : index
    %15 = vector.load %arg5[%c0_7, %c0_8, %c0_9] : memref<1x32x8xf32, #tpu.memory_space<vmem>>, vector<1x32x8xf32>
    %16 = vector.shape_cast %15 : vector<1x32x8xf32> to vector<32x8xf32>
    %17 = vector.shape_cast %14 : vector<32x8xf32> to vector<1x32x8xf32>
    tpu.vector_store %arg5[%c0_7, %c0_8, %c0_9], %17 {strides = array<i32>} : memref<1x32x8xf32, #tpu.memory_space<vmem>>, vector<1x32x8xf32>,
    return
  }
  func.func @transform_0(%arg0: i32, %arg1: i32) -> (i32, i32, i32, i32) {
    %c0_i32 = arith.constant 0 : i32
    %c0_i32_0 = arith.constant 0 : i32
    %c0_i32_1 = arith.constant 0 : i32
    return %arg0, %arg1, %c0_i32, %c0_i32_0 : i32, i32, i32, i32
  }
  func.func @transform_1(%arg0: i32, %arg1: i32) -> (i32, i32) {
    %c0_i32 = arith.constant 0 : i32
    %c0_i32_0 = arith.constant 0 : i32
    %c0_i32_1 = arith.constant 0 : i32
    return %c0_i32, %c0_i32_0 : i32, i32
  }
  func.func @transform_2(%arg0: i32, %arg1: i32) -> (i32, i32) {
    %c0_i32 = arith.constant 0 : i32
    %c0_i32_0 = arith.constant 0 : i32
    %c0_i32_1 = arith.constant 0 : i32
    return %c0_i32, %c0_i32_0 : i32, i32
  }
  func.func @transform_3(%arg0: i32, %arg1: i32) -> (i32, i32, i32) {
    %c0_i32 = arith.constant 0 : i32
    %c0_i32_0 = arith.constant 0 : i32
    return %arg0, %c0_i32, %arg1 : i32, i32, i32
  }
}

</mosaic_0001>

<llo_original>
// kernel: tpu_custom_call.1
$region0: #{tpu_custom_call.1}
  #allocation0 [shape = 'u32[]', space=smem, size = 0x4, offset = 0x4, fixed_abs, tag = 'smem constant byte address 0x4 - core index']
  #allocation1 [shape = 'u32[144,128]{1,0:T(1,128)}', space=vmem, size = 0x12000, scoped, tag = 'internal scratch']
  %s0 = inlined_call_operand.vmem [shape: f32[2,1,16,14], index: 0, kind: input, shape index: {}]
  %s1 = inlined_call_operand.vmem [shape: f32[32,112], index: 1, kind: input, shape index: {}]
  %s2 = inlined_call_operand.vmem [shape: f32[32,1], index: 2, kind: input, shape index: {}]
  %s3 = inlined_call_operand.vmem [shape: f32[2,32,8], index: 3, kind: output, shape index: {}]
  %s4 = sld [smem:[#allocation0]]
  $region45: #{tpu_custom_call.1} parent=0
    _
  %s6 = ssub.s32 1, %s4
  %s7 = scalar_select 0, %s6, %s4
  loop: start=0, step=1, limit=4
  $region2: #{tpu_custom_call.1} parent=0 // loop_pre_header
    _
  $region3: #{tpu_custom_call.1} parent=0 // loop_header
    %s9 = sphi 0, %s13
    %p10 = scmp.ge.s32.totalorder %s9, 4
    %s16 = sphi 0, %s28
    %s17 = sphi 0, %s24
    %s18 = sphi 0, %s16
    %s19 = sphi 0, %s17
    %s20 = sphi 0, %s18
    %s21 = sphi 0, %s19
    %s33 = sphi 0, %s35
    %s36 = sphi 0, %s33
    %s37 = sphi 0, %s36
    %s53 = sphi 0, %s37
    %s57 = sphi 0, %s57
    %s59 = sphi 0, %s57
    %s60 = sphi 0, %s59
    %s74 = sphi 0, %s60
    %s78 = sphi 0, %s78
    %s80 = sphi 0, %s78
    %s81 = sphi 0, %s80
    %s95 = sphi 0, %s81
    %s103 = sphi 0, %s105
    %s106 = sphi 0, %s103
    %s107 = sphi 0, %s106
    %s123 = sphi 0, %s107
  $region4: #{tpu_custom_call.1} parent=0 // loop_header_branch
    %12 = sbr.rel (%p10) target = $region8
  $region5: #{tpu_custom_call.1} parent=0 // loop_body
    %s14 = ssub.s32 %s9, 1
    %s15 = ssub.s32 %s9, 2
    %s22 = sadd.s32 1, %s17
    %p23 = scmp.ge.s32.totalorder %s22, 1
    %s24 = scalar_select %p23, 0, %s22
    %s25 = sadd.s32 1, %s16
    %s26 = scalar_select %p23, %s25, %s16
    %p27 = scmp.ge.s32.totalorder %s26, 2
    %s28 = scalar_select %p27, 0, %s26
    %s29 = ssub.s32 %s16, %s28
    %s30 = ssub.s32 %s17, %s24
    %s31 = sor.u32 %s29, %s30
    %p32 = scmp.eq.s32.totalorder %s31, 0
    %s34 = sadd.s32 %s33, 1
    %s35 = scalar_select %p32, %s33, %s34
    %p38 = pneg %p32
    %p39 = scmp.eq.s32.totalorder %s9, 1
    %p40 = por %p38, %p39
    %p41 = scmp.ne.s32.totalorder %s33, %s36
    %p42 = scmp.eq.s32.totalorder %s9, 0
    %p43 = por %p41, %p42
    %p44 = scmp.ne.s32.totalorder %s33, %s36
    %p45 = scmp.eq.s32.totalorder %s14, 1
    %p46 = por %p44, %p45
    %p47 = scmp.ne.s32.totalorder %s36, %s37
    %p48 = scmp.eq.s32.totalorder %s14, 0
    %p49 = por %p47, %p48
    %p50 = scmp.ne.s32.totalorder %s36, %s37
    %p51 = scmp.eq.s32.totalorder %s15, 1
    %p52 = por %p50, %p51
    %p54 = scmp.ne.s32.totalorder %s37, %s53
    %p55 = scmp.eq.s32.totalorder %s15, 0
    %p56 = por %p54, %p55
    %s58 = sadd.s32 %s57, 1
    %p61 = scmp.eq.s32.totalorder %s9, 1
    %p62 = scmp.ne.s32.totalorder %s57, %s59
    %p63 = scmp.eq.s32.totalorder %s9, 0
    %p64 = por %p62, %p63
    %p65 = scmp.ne.s32.totalorder %s57, %s59
    %p66 = scmp.eq.s32.totalorder %s14, 1
    %p67 = por %p65, %p66
    %p68 = scmp.ne.s32.totalorder %s59, %s60
    %p69 = scmp.eq.s32.totalorder %s14, 0
    %p70 = por %p68, %p69
    %p71 = scmp.ne.s32.totalorder %s59, %s60
    %p72 = scmp.eq.s32.totalorder %s15, 1
    %p73 = por %p71, %p72
    %p75 = scmp.ne.s32.totalorder %s60, %s74
    %p76 = scmp.eq.s32.totalorder %s15, 0
    %p77 = por %p75, %p76
    %s79 = sadd.s32 %s78, 1
    %p82 = scmp.eq.s32.totalorder %s9, 1
    %p83 = scmp.ne.s32.totalorder %s78, %s80
    %p84 = scmp.eq.s32.totalorder %s9, 0
    %p85 = por %p83, %p84
    %p86 = scmp.ne.s32.totalorder %s78, %s80
    %p87 = scmp.eq.s32.totalorder %s14, 1
    %p88 = por %p86, %p87
    %p89 = scmp.ne.s32.totalorder %s80, %s81
    %p90 = scmp.eq.s32.totalorder %s14, 0
    %p91 = por %p89, %p90
    %p92 = scmp.ne.s32.totalorder %s80, %s81
    %p93 = scmp.eq.s32.totalorder %s15, 1
    %p94 = por %p92, %p93
    %p96 = scmp.ne.s32.totalorder %s81, %s95
    %p97 = scmp.eq.s32.totalorder %s15, 0
    %p98 = por %p96, %p97
    %s99 = ssub.s32 %s16, %s28
    %s100 = ssub.s32 %s17, %s24
    %s101 = sor.u32 %s99, %s100
    %p102 = scmp.eq.s32.totalorder %s101, 0
    %s104 = sadd.s32 %s103, 1
    %s105 = scalar_select %p102, %s103, %s104
    %p108 = pneg %p102
    %p109 = scmp.eq.s32.totalorder %s9, 1
    %p110 = por %p108, %p109
    %p111 = scmp.ne.s32.totalorder %s103, %s106
    %p112 = scmp.eq.s32.totalorder %s9, 0
    %p113 = por %p111, %p112
    %p114 = scmp.ne.s32.totalorder %s103, %s106
    %p115 = scmp.eq.s32.totalorder %s14, 1
    %p116 = por %p114, %p115
    %p117 = scmp.ne.s32.totalorder %s106, %s107
    %p118 = scmp.eq.s32.totalorder %s14, 0
    %p119 = por %p117, %p118
    %p120 = scmp.ne.s32.totalorder %s106, %s107
    %p121 = scmp.eq.s32.totalorder %s15, 1
    %p122 = por %p120, %p121
    %p124 = scmp.ne.s32.totalorder %s107, %s123
    %p125 = scmp.eq.s32.totalorder %s15, 0
    %p126 = por %p124, %p125
    %p127 = scmp.le.s32.totalorder 1, %s9
    %p128 = scmp.lt.s32.totalorder %s9, 3
    %p129 = pnand %p127, %p128
    %p130 = pneg %p129
    // Predicated region
    $region9: #{tpu_custom_call.1} parent=5 // pred_check
      _
    $region10: #{tpu_custom_call.1} parent=5 // pred_check_branch
      %132 = sbr.rel (%p129) target = $region12
    $region11: #{tpu_custom_call.1} parent=5 // pred_region
      %s133 = ssub.s32 %s9, 1
      // Predicated region
      $region13: #{tpu_custom_call.1} parent=11 // pred_check
        %p134 = pneg %p70
      $region14: #{tpu_custom_call.1} parent=11 // pred_check_branch
        %136 = sbr.rel (%p134) target = $region16
      $region15: #{tpu_custom_call.1} parent=11 // pred_region
        _
      $region16: #{tpu_custom_call.1} parent=11 // pred_fallthru
        _
      // Predicated region
      $region17: #{tpu_custom_call.1} parent=11 // pred_check
        %p137 = pneg %p91
      $region18: #{tpu_custom_call.1} parent=11 // pred_check_branch
        %139 = sbr.rel (%p137) target = $region20
      $region19: #{tpu_custom_call.1} parent=11 // pred_region
        _
      $region20: #{tpu_custom_call.1} parent=11 // pred_fallthru
        _
    $region12: #{tpu_custom_call.1} parent=5 // pred_fallthru
      _
    %p140 = scmp.lt.s32.totalorder %s9, 2
    // Predicated region
    $region21: #{tpu_custom_call.1} parent=5 // pred_check
      %p141 = pneg %p140
    $region22: #{tpu_custom_call.1} parent=5 // pred_check_branch
      %143 = sbr.rel (%p141) target = $region24
    $region23: #{tpu_custom_call.1} parent=5 // pred_region
      // Predicated region
      $region25: #{tpu_custom_call.1} parent=23 // pred_check
        %p144 = pneg %p43
      $region26: #{tpu_custom_call.1} parent=23 // pred_check_branch
        %146 = sbr.rel (%p144) target = $region28
      $region27: #{tpu_custom_call.1} parent=23 // pred_region
        %p147 = scmp.lt.s32.totalorder %s16, 1
        %s148 = scalar_select %p147, %s16, 1
        %p149 = scmp.lt.s32.totalorder %s17, 0
        %s150 = scalar_select %p149, %s17, 0
        %s151 = smul.addr %s150, 2
        %s152 = smul.addr %s148, 2
        %s153 = sadd.s32 %s151, %s152
        %s154 = smul.addr %s153, 8
        %s155 = scalar_lea.vmem %s0, %s154
      $region28: #{tpu_custom_call.1} parent=23 // pred_fallthru
        _
    $region24: #{tpu_custom_call.1} parent=5 // pred_fallthru
      _
    %p156 = scmp.le.s32.totalorder 1, %s9
    %p157 = scmp.lt.s32.totalorder %s9, 3
    %p158 = pnand %p156, %p157
    %p159 = pneg %p158
    // Predicated region
    $region29: #{tpu_custom_call.1} parent=5 // pred_check
      _
    $region30: #{tpu_custom_call.1} parent=5 // pred_check_branch
      %161 = sbr.rel (%p158) target = $region32
    $region31: #{tpu_custom_call.1} parent=5 // pred_region
      %s162 = ssub.s32 %s9, 1
      %p163 = scmp.lt.s32.totalorder %s18, 1
      %s164 = scalar_select %p163, %s18, 1
      %p165 = scmp.lt.s32.totalorder %s19, 0
      %s166 = scalar_select %p165, %s19, 0
      %s167 = smul.addr %s166, 2
      %s168 = smul.addr %s164, 2
      %s169 = sadd.s32 %s167, %s168
      %s170 = smul.addr %s169, 8
      %s171 = scalar_lea.vmem %s0, %s170
      %p172 = pneg %p49
      %p173 = pneg %p46
      %p174 = pneg %p70
      %p175 = pneg %p67
      %p176 = pneg %p91
      %p177 = pneg %p88
      %p178 = pneg %p119
      %p179 = pneg %p116
      %p180 = scmp.lt.s32.totalorder %s18, 1
      %s181 = scalar_select %p180, %s18, 1
      %p182 = scmp.lt.s32.totalorder %s19, 0
      %s183 = scalar_select %p182, %s19, 0
      %s184 = smul.addr %s181, 4
      %s185 = sadd.s32 %s183, %s184
      %s186 = smul.addr %s185, 8
      %s187 = scalar_lea.vmem %s3, %s186
      %p188 = scmp.lt.s32.totalorder %s18, 1
      %s189 = scalar_select %p188, %s18, 1
      %p190 = scmp.lt.s32.totalorder %s19, 0
      %s191 = scalar_select %p190, %s19, 0
      %s192 = smul.addr %s191, 2
      %s193 = smul.addr %s189, 2
      %s194 = sadd.s32 %s192, %s193
      %s195 = smul.addr %s194, 8
      %s196 = scalar_lea.vmem %s0, %s195
      %p197 = scmp.lt.s32.totalorder %s18, 1
      %s198 = scalar_select %p197, %s18, 1
      %p199 = scmp.lt.s32.totalorder %s19, 0
      %s200 = scalar_select %p199, %s19, 0
      %s201 = smul.addr %s198, 4
      %s202 = sadd.s32 %s200, %s201
      %s203 = smul.addr %s202, 8
      %s204 = scalar_lea.vmem %s3, %s203
      %v205 = vld [vmem:[%s196] sm:$0xff]
      %v206 = vld [vmem:[%s196 + $0x8] sm:$0xff]
      %209 = vrot.lane.b32.xlu0 %v205, 127
      %v210 = vpop.permute.xlu0 %209
      %211 = vrot.lane.b32.xlu0 %v206, 127
      %v212 = vpop.permute.xlu0 %211
      %215 = vrot.lane.b32.xlu0 %v205, 126
      %v216 = vpop.permute.xlu0 %215
      %217 = vrot.lane.b32.xlu0 %v206, 126
      %v218 = vpop.permute.xlu0 %217
      %221 = vrot.lane.b32.xlu0 %v205, 125
      %v222 = vpop.permute.xlu0 %221
      %223 = vrot.lane.b32.xlu0 %v206, 125
      %v224 = vpop.permute.xlu0 %223
      %227 = vrot.lane.b32.xlu0 %v205, 124
      %v228 = vpop.permute.xlu0 %227
      %229 = vrot.lane.b32.xlu0 %v206, 124
      %v230 = vpop.permute.xlu0 %229
      %233 = vrot.lane.b32.xlu0 %v205, 123
      %v234 = vpop.permute.xlu0 %233
      %235 = vrot.lane.b32.xlu0 %v206, 123
      %v236 = vpop.permute.xlu0 %235
      %239 = vrot.lane.b32.xlu0 %v205, 122
      %v240 = vpop.permute.xlu0 %239
      %241 = vrot.lane.b32.xlu0 %v206, 122
      %v242 = vpop.permute.xlu0 %241
      %v245 = vld [vmem:[%s1] sm:$0xff]
      %v246 = vld [vmem:[%s1 + $0x8] sm:$0xff]
      %v247 = vld [vmem:[%s1 + $0x10] sm:$0xff]
      %v248 = vld [vmem:[%s1 + $0x18] sm:$0xff]
      %v249 = vld [vmem:[%s2] sm:$0xff]
      %v250 = vld [vmem:[%s2 + $0x8] sm:$0xff]
      %v251 = vld [vmem:[%s2 + $0x10] sm:$0xff]
      %v252 = vld [vmem:[%s2 + $0x18] sm:$0xff]
      %254 = vset.pattern.permute.xlu0 0
      %255 = vperm.xlu0 %254, %v249
      %v256 = vpop.permute.xlu0 %255
      %259 = vset.pattern.permute.xlu0 0
      %260 = vperm.xlu0 %259, %v250
      %v261 = vpop.permute.xlu0 %260
      %264 = vset.pattern.permute.xlu0 0
      %265 = vperm.xlu0 %264, %v251
      %v266 = vpop.permute.xlu0 %265
      %269 = vset.pattern.permute.xlu0 0
      %270 = vperm.xlu0 %269, %v252
      %v271 = vpop.permute.xlu0 %270
      %vm273 = vcmask 916480
      %v275 = vsel %vm273, %v245, 0
      %v278 = vsel %vm273, %v246, 0
      %v281 = vsel %vm273, %v247, 0
      %v284 = vsel %vm273, %v248, 0
      %286 = vmatprep.subr.mxu0 0.0
      %v287 = vand.u32 %v205, 4294901760
      %288 = vmatpush1.msra.mxu0 %v287
      %289 = vmatprep.subr.mxu0 0.0
      %v290 = vand.u32 %v206, 4294901760
      %291 = vmatpush1.msra.mxu0 %v290
      %292 = vmatprep.subr.mxu0 0.0
      %v293 = vand.u32 %v210, 4294901760
      %294 = vmatpush1.msra.mxu0 %v293
      %295 = vmatprep.subr.mxu0 0.0
      %v296 = vand.u32 %v212, 4294901760
      %297 = vmatpush1.msra.mxu0 %v296
      %298 = vmatprep.subr.mxu0 0.0
      %v299 = vand.u32 %v216, 4294901760
      %300 = vmatpush1.msra.mxu0 %v299
      %301 = vmatprep.subr.mxu0 0.0
      %v302 = vand.u32 %v218, 4294901760
      %303 = vmatpush1.msra.mxu0 %v302
      %304 = vmatprep.subr.mxu0 0.0
      %v305 = vand.u32 %v222, 4294901760
      %306 = vmatpush1.msra.mxu0 %v305
      %307 = vmatprep.subr.mxu0 0.0
      %v308 = vand.u32 %v224, 4294901760
      %309 = vmatpush1.msra.mxu0 %v308
      %310 = vmatprep.subr.mxu0 0.0
      %v311 = vand.u32 %v228, 4294901760
      %312 = vmatpush1.msra.mxu0 %v311
      %313 = vmatprep.subr.mxu0 0.0
      %v314 = vand.u32 %v230, 4294901760
      %315 = vmatpush1.msra.mxu0 %v314
      %316 = vmatprep.subr.mxu0 0.0
      %v317 = vand.u32 %v234, 4294901760
      %318 = vmatpush1.msra.mxu0 %v317
      %319 = vmatprep.subr.mxu0 0.0
      %v320 = vand.u32 %v236, 4294901760
      %321 = vmatpush1.msra.mxu0 %v320
      %322 = vmatprep.subr.mxu0 0.0
      %v323 = vand.u32 %v240, 4294901760
      %324 = vmatpush1.msra.mxu0 %v323
      %325 = vmatprep.subr.mxu0 0.0
      %v326 = vand.u32 %v242, 4294901760
      %327 = vmatpush1.msra.mxu0 %v326
      %328 = vmatprep.subr.mxu0 0.0
      %329 = vmatpush1.msra.mxu0 0.0
      %330 = vmatprep.subr.mxu0 0.0
      %331 = vmatpush1.msra.mxu0 0.0
      %332 = vmatprep.subr.mxu0 0.0
      %333 = vmatpush1.msra.mxu0 0.0
      %334 = vmatprep.subr.mxu0 0.0
      %335 = vmatpush1.msra.mxu0 0.0
      %336 = vmatprep.subr.mxu0 0.0
      %337 = vmatpush1.msra.mxu0 0.0
      %338 = vmatprep.subr.mxu0 0.0
      %339 = vmatpush1.msra.mxu0 0.0
      %340 = vmatprep.subr.mxu0 0.0
      %341 = vmatpush1.msra.mxu0 0.0
      %342 = vmatprep.subr.mxu0 0.0
      %343 = vmatpush1.msra.mxu0 0.0
      %344 = vmatprep.subr.mxu0 0.0
      %345 = vmatpush1.msra.mxu0 0.0
      %346 = vmatprep.subr.mxu0 0.0
      %347 = vmatpush1.msra.mxu0 0.0
      %348 = vmatprep.subr.mxu0 0.0
      %349 = vmatpush1.msra.mxu0 0.0
      %350 = vmatprep.subr.mxu0 0.0
      %351 = vmatpush1.msra.mxu0 0.0
      %352 = vmatprep.subr.mxu0 0.0
      %353 = vmatpush1.msra.mxu0 0.0
      %354 = vmatprep.subr.mxu0 0.0
      %355 = vmatpush1.msra.mxu0 0.0
      %356 = vmatprep.subr.mxu0 0.0
      %357 = vmatpush1.msra.mxu0 0.0
      %358 = vmatprep.subr.mxu0 0.0
      %359 = vmatpush1.msra.mxu0 0.0
      %360 = vmatprep.subr.mxu0 0.0
      %361 = vmatpush1.msra.mxu0 0.0
      %362 = vmatprep.subr.mxu0 0.0
      %363 = vmatpush1.msra.mxu0 0.0
      %364 = vmatprep.mubr.f32.mxu0 0.0
      %v365 = vand.u32 %v275, 4294901760
      %v366 = vsub.f32 %v275, %v365
      %v367 = vand.u32 %v366, 4294901760
      %v368 = vsub.f32 %v366, %v367
      %v369 = vand.u32 %v368, 4294901760
      %370 = vmatmul.mubr.f32.gmra.mrb[0].mxu0 %v369
      %v371 = vpop.f32.mrb[0].mxu0
      %v372 = vadd.f32 %v256, %v371
      %v373 = vpop.f32.mrb[0].mxu0
      %374 = vmatprep.mubr.f32.mxu0 0.0
      %v375 = vand.u32 %v278, 4294901760
      %v376 = vsub.f32 %v278, %v375
      %v377 = vand.u32 %v376, 4294901760
      %v378 = vsub.f32 %v376, %v377
      %v379 = vand.u32 %v378, 4294901760
      %380 = vmatmul.mubr.f32.gmra.mrb[0].mxu0 %v379
      %v381 = vpop.f32.mrb[0].mxu0
      %v382 = vadd.f32 %v261, %v381
      %v383 = vpop.f32.mrb[0].mxu0
      %384 = vmatprep.mubr.f32.mxu0 0.0
      %v385 = vand.u32 %v281, 4294901760
      %v386 = vsub.f32 %v281, %v385
      %v387 = vand.u32 %v386, 4294901760
      %v388 = vsub.f32 %v386, %v387
      %v389 = vand.u32 %v388, 4294901760
      %390 = vmatmul.mubr.f32.gmra.mrb[0].mxu0 %v389
      %v391 = vpop.f32.mrb[0].mxu0
      %v392 = vadd.f32 %v266, %v391
      %v393 = vpop.f32.mrb[0].mxu0
      %394 = vmatprep.mubr.f32.mxu0 0.0
      %v395 = vand.u32 %v284, 4294901760
      %v396 = vsub.f32 %v284, %v395
      %v397 = vand.u32 %v396, 4294901760
      %v398 = vsub.f32 %v396, %v397
      %v399 = vand.u32 %v398, 4294901760
      %400 = vmatmul.mubr.f32.gmra.mrb[0].mxu0 %v399
      %v401 = vpop.f32.mrb[0].mxu0
      %v402 = vadd.f32 %v271, %v401
      %v403 = vpop.f32.mrb[0].mxu0
      %404 = vdwg.mxu0
      %405 = vmatprep.subr.mxu0 0.0
      %v406 = vand.u32 %v205, 4294901760
      %v407 = vsub.f32 %v205, %v406
      %v408 = vand.u32 %v407, 4294901760
      %v409 = vsub.f32 %v407, %v408
      %v410 = vand.u32 %v409, 4294901760
      %411 = vmatpush1.msra.mxu0 %v410
      %412 = vmatprep.subr.mxu0 0.0
      %v413 = vand.u32 %v206, 4294901760
      %v414 = vsub.f32 %v206, %v413
      %v415 = vand.u32 %v414, 4294901760
      %v416 = vsub.f32 %v414, %v415
      %v417 = vand.u32 %v416, 4294901760
      %418 = vmatpush1.msra.mxu0 %v417
      %419 = vmatprep.subr.mxu0 0.0
      %v420 = vand.u32 %v210, 4294901760
      %v421 = vsub.f32 %v210, %v420
      %v422 = vand.u32 %v421, 4294901760
      %v423 = vsub.f32 %v421, %v422
      %v424 = vand.u32 %v423, 4294901760
      %425 = vmatpush1.msra.mxu0 %v424
      %426 = vmatprep.subr.mxu0 0.0
      %v427 = vand.u32 %v212, 4294901760
      %v428 = vsub.f32 %v212, %v427
      %v429 = vand.u32 %v428, 4294901760
      %v430 = vsub.f32 %v428, %v429
      %v431 = vand.u32 %v430, 4294901760
      %432 = vmatpush1.msra.mxu0 %v431
      %433 = vmatprep.subr.mxu0 0.0
      %v434 = vand.u32 %v216, 4294901760
      %v435 = vsub.f32 %v216, %v434
      %v436 = vand.u32 %v435, 4294901760
      %v437 = vsub.f32 %v435, %v436
      %v438 = vand.u32 %v437, 4294901760
      %439 = vmatpush1.msra.mxu0 %v438
      %440 = vmatprep.subr.mxu0 0.0
      %v441 = vand.u32 %v218, 4294901760
      %v442 = vsub.f32 %v218, %v441
      %v443 = vand.u32 %v442, 4294901760
      %v444 = vsub.f32 %v442, %v443
      %v445 = vand.u32 %v444, 4294901760
      %446 = vmatpush1.msra.mxu0 %v445
      %447 = vmatprep.subr.mxu0 0.0
      %v448 = vand.u32 %v222, 4294901760
      %v449 = vsub.f32 %v222, %v448
      %v450 = vand.u32 %v449, 4294901760
      %v451 = vsub.f32 %v449, %v450
      %v452 = vand.u32 %v451, 4294901760
      %453 = vmatpush1.msra.mxu0 %v452
      %454 = vmatprep.subr.mxu0 0.0
      %v455 = vand.u32 %v224, 4294901760
      %v456 = vsub.f32 %v224, %v455
      %v457 = vand.u32 %v456, 4294901760
      %v458 = vsub.f32 %v456, %v457
      %v459 = vand.u32 %v458, 4294901760
      %460 = vmatpush1.msra.mxu0 %v459
      %461 = vmatprep.subr.mxu0 0.0
      %v462 = vand.u32 %v228, 4294901760
      %v463 = vsub.f32 %v228, %v462
      %v464 = vand.u32 %v463, 4294901760
      %v465 = vsub.f32 %v463, %v464
      %v466 = vand.u32 %v465, 4294901760
      %467 = vmatpush1.msra.mxu0 %v466
      %468 = vmatprep.subr.mxu0 0.0
      %v469 = vand.u32 %v230, 4294901760
      %v470 = vsub.f32 %v230, %v469
      %v471 = vand.u32 %v470, 4294901760
      %v472 = vsub.f32 %v470, %v471
      %v473 = vand.u32 %v472, 4294901760
      %474 = vmatpush1.msra.mxu0 %v473
      %475 = vmatprep.subr.mxu0 0.0
      %v476 = vand.u32 %v234, 4294901760
      %v477 = vsub.f32 %v234, %v476
      %v478 = vand.u32 %v477, 4294901760
      %v479 = vsub.f32 %v477, %v478
      %v480 = vand.u32 %v479, 4294901760
      %481 = vmatpush1.msra.mxu0 %v480
      %482 = vmatprep.subr.mxu0 0.0
      %v483 = vand.u32 %v236, 4294901760
      %v484 = vsub.f32 %v236, %v483
      %v485 = vand.u32 %v484, 4294901760
      %v486 = vsub.f32 %v484, %v485
      %v487 = vand.u32 %v486, 4294901760
      %488 = vmatpush1.msra.mxu0 %v487
      %489 = vmatprep.subr.mxu0 0.0
      %v490 = vand.u32 %v240, 4294901760
      %v491 = vsub.f32 %v240, %v490
      %v492 = vand.u32 %v491, 4294901760
      %v493 = vsub.f32 %v491, %v492
      %v494 = vand.u32 %v493, 4294901760
      %495 = vmatpush1.msra.mxu0 %v494
      %496 = vmatprep.subr.mxu0 0.0
      %v497 = vand.u32 %v242, 4294901760
      %v498 = vsub.f32 %v242, %v497
      %v499 = vand.u32 %v498, 4294901760
      %v500 = vsub.f32 %v498, %v499
      %v501 = vand.u32 %v500, 4294901760
      %502 = vmatpush1.msra.mxu0 %v501
      %503 = vmatprep.subr.mxu0 0.0
      %504 = vmatpush1.msra.mxu0 0.0
      %505 = vmatprep.subr.mxu0 0.0
      %506 = vmatpush1.msra.mxu0 0.0
      %507 = vmatprep.subr.mxu0 0.0
      %508 = vmatpush1.msra.mxu0 0.0
      %509 = vmatprep.subr.mxu0 0.0
      %510 = vmatpush1.msra.mxu0 0.0
      %511 = vmatprep.subr.mxu0 0.0
      %512 = vmatpush1.msra.mxu0 0.0
      %513 = vmatprep.subr.mxu0 0.0
      %514 = vmatpush1.msra.mxu0 0.0
      %515 = vmatprep.subr.mxu0 0.0
      %516 = vmatpush1.msra.mxu0 0.0
      %517 = vmatprep.subr.mxu0 0.0
      %518 = vmatpush1.msra.mxu0 0.0
      %519 = vmatprep.subr.mxu0 0.0
      %520 = vmatpush1.msra.mxu0 0.0
      %521 = vmatprep.subr.mxu0 0.0
      %522 = vmatpush1.msra.mxu0 0.0
      %523 = vmatprep.subr.mxu0 0.0
      %524 = vmatpush1.msra.mxu0 0.0
      %525 = vmatprep.subr.mxu0 0.0
      %526 = vmatpush1.msra.mxu0 0.0
      %527 = vmatprep.subr.mxu0 0.0
      %528 = vmatpush1.msra.mxu0 0.0
      %529 = vmatprep.subr.mxu0 0.0
      %530 = vmatpush1.msra.mxu0 0.0
      %531 = vmatprep.subr.mxu0 0.0
      %532 = vmatpush1.msra.mxu0 0.0
      %533 = vmatprep.subr.mxu0 0.0
      %534 = vmatpush1.msra.mxu0 0.0
      %535 = vmatprep.subr.mxu0 0.0
      %536 = vmatpush1.msra.mxu0 0.0
      %537 = vmatprep.subr.mxu0 0.0
      %538 = vmatpush1.msra.mxu0 0.0
      %539 = vmatprep.mubr.f32.mxu0 0.0
      %v540 = vand.u32 %v275, 4294901760
      %541 = vmatmul.mubr.f32.gmra.mrb[0].mxu0 %v540
      %v542 = vpop.f32.mrb[0].mxu0
      %v543 = vadd.f32 %v372, %v542
      %v544 = vpop.f32.mrb[0].mxu0
      %545 = vmatprep.mubr.f32.mxu0 0.0
      %v546 = vand.u32 %v278, 4294901760
      %547 = vmatmul.mubr.f32.gmra.mrb[0].mxu0 %v546
      %v548 = vpop.f32.mrb[0].mxu0
      %v549 = vadd.f32 %v382, %v548
      %v550 = vpop.f32.mrb[0].mxu0
      %551 = vmatprep.mubr.f32.mxu0 0.0
      %v552 = vand.u32 %v281, 4294901760
      %553 = vmatmul.mubr.f32.gmra.mrb[0].mxu0 %v552
      %v554 = vpop.f32.mrb[0].mxu0
      %v555 = vadd.f32 %v392, %v554
      %v556 = vpop.f32.mrb[0].mxu0
      %557 = vmatprep.mubr.f32.mxu0 0.0
      %v558 = vand.u32 %v284, 4294901760
      %559 = vmatmul.mubr.f32.gmra.mrb[0].mxu0 %v558
      %v560 = vpop.f32.mrb[0].mxu0
      %v561 = vadd.f32 %v402, %v560
      %v562 = vpop.f32.mrb[0].mxu0
      %563 = vdwg.mxu0
      %564 = vmatprep.subr.mxu0 0.0
      %v565 = vand.u32 %v205, 4294901760
      %v566 = vsub.f32 %v205, %v565
      %567 = vmatpush1.msra.mxu0 %v566
      %568 = vmatprep.subr.mxu0 0.0
      %v569 = vand.u32 %v206, 4294901760
      %v570 = vsub.f32 %v206, %v569
      %571 = vmatpush1.msra.mxu0 %v570
      %572 = vmatprep.subr.mxu0 0.0
      %v573 = vand.u32 %v210, 4294901760
      %v574 = vsub.f32 %v210, %v573
      %575 = vmatpush1.msra.mxu0 %v574
      %576 = vmatprep.subr.mxu0 0.0
      %v577 = vand.u32 %v212, 4294901760
      %v578 = vsub.f32 %v212, %v577
      %579 = vmatpush1.msra.mxu0 %v578
      %580 = vmatprep.subr.mxu0 0.0
      %v581 = vand.u32 %v216, 4294901760
      %v582 = vsub.f32 %v216, %v581
      %583 = vmatpush1.msra.mxu0 %v582
      %584 = vmatprep.subr.mxu0 0.0
      %v585 = vand.u32 %v218, 4294901760
      %v586 = vsub.f32 %v218, %v585
      %587 = vmatpush1.msra.mxu0 %v586
      %588 = vmatprep.subr.mxu0 0.0
      %v589 = vand.u32 %v222, 4294901760
      %v590 = vsub.f32 %v222, %v589
      %591 = vmatpush1.msra.mxu0 %v590
      %592 = vmatprep.subr.mxu0 0.0
      %v593 = vand.u32 %v224, 4294901760
      %v594 = vsub.f32 %v224, %v593
      %595 = vmatpush1.msra.mxu0 %v594
      %596 = vmatprep.subr.mxu0 0.0
      %v597 = vand.u32 %v228, 4294901760
      %v598 = vsub.f32 %v228, %v597
      %599 = vmatpush1.msra.mxu0 %v598
      %600 = vmatprep.subr.mxu0 0.0
      %v601 = vand.u32 %v230, 4294901760
      %v602 = vsub.f32 %v230, %v601
      %603 = vmatpush1.msra.mxu0 %v602
      %604 = vmatprep.subr.mxu0 0.0
      %v605 = vand.u32 %v234, 4294901760
      %v606 = vsub.f32 %v234, %v605
      %607 = vmatpush1.msra.mxu0 %v606
      %608 = vmatprep.subr.mxu0 0.0
      %v609 = vand.u32 %v236, 4294901760
      %v610 = vsub.f32 %v236, %v609
      %611 = vmatpush1.msra.mxu0 %v610
      %612 = vmatprep.subr.mxu0 0.0
      %v613 = vand.u32 %v240, 4294901760
      %v614 = vsub.f32 %v240, %v613
      %615 = vmatpush1.msra.mxu0 %v614
      %616 = vmatprep.subr.mxu0 0.0
      %v617 = vand.u32 %v242, 4294901760
      %v618 = vsub.f32 %v242, %v617
      %619 = vmatpush1.msra.mxu0 %v618
      %620 = vmatprep.subr.mxu0 0.0
      %621 = vmatpush1.msra.mxu0 0.0
      %622 = vmatprep.subr.mxu0 0.0
      %623 = vmatpush1.msra.mxu0 0.0
      %624 = vmatprep.subr.mxu0 0.0
      %625 = vmatpush1.msra.mxu0 0.0
      %626 = vmatprep.subr.mxu0 0.0
      %627 = vmatpush1.msra.mxu0 0.0
      %628 = vmatprep.subr.mxu0 0.0
      %629 = vmatpush1.msra.mxu0 0.0
      %630 = vmatprep.subr.mxu0 0.0
      %631 = vmatpush1.msra.mxu0 0.0
      %632 = vmatprep.subr.mxu0 0.0
      %633 = vmatpush1.msra.mxu0 0.0
      %634 = vmatprep.subr.mxu0 0.0
      %635 = vmatpush1.msra.mxu0 0.0
      %636 = vmatprep.subr.mxu0 0.0
      %637 = vmatpush1.msra.mxu0 0.0
      %638 = vmatprep.subr.mxu0 0.0
      %639 = vmatpush1.msra.mxu0 0.0
      %640 = vmatprep.subr.mxu0 0.0
      %641 = vmatpush1.msra.mxu0 0.0
      %642 = vmatprep.subr.mxu0 0.0
      %643 = vmatpush1.msra.mxu0 0.0
      %644 = vmatprep.subr.mxu0 0.0
      %645 = vmatpush1.msra.mxu0 0.0
      %646 = vmatprep.subr.mxu0 0.0
      %647 = vmatpush1.msra.mxu0 0.0
      %648 = vmatprep.subr.mxu0 0.0
      %649 = vmatpush1.msra.mxu0 0.0
      %650 = vmatprep.subr.mxu0 0.0
      %651 = vmatpush1.msra.mxu0 0.0
      %652 = vmatprep.subr.mxu0 0.0
      %653 = vmatpush1.msra.mxu0 0.0
      %654 = vmatprep.subr.mxu0 0.0
      %655 = vmatpush1.msra.mxu0 0.0
      %656 = vmatprep.mubr.f32.mxu0 0.0
      %v657 = vand.u32 %v275, 4294901760
      %v658 = vsub.f32 %v275, %v657
      %659 = vmatmul.mubr.f32.gmra.mrb[0].mxu0 %v658
      %v660 = vpop.f32.mrb[0].mxu0
      %v661 = vadd.f32 %v543, %v660
      %v662 = vpop.f32.mrb[0].mxu0
      %663 = vmatprep.mubr.f32.mxu0 0.0
      %v664 = vand.u32 %v278, 4294901760
      %v665 = vsub.f32 %v278, %v664
      %666 = vmatmul.mubr.f32.gmra.mrb[0].mxu0 %v665
      %v667 = vpop.f32.mrb[0].mxu0
      %v668 = vadd.f32 %v549, %v667
      %v669 = vpop.f32.mrb[0].mxu0
      %670 = vmatprep.mubr.f32.mxu0 0.0
      %v671 = vand.u32 %v281, 4294901760
      %v672 = vsub.f32 %v281, %v671
      %673 = vmatmul.mubr.f32.gmra.mrb[0].mxu0 %v672
      %v674 = vpop.f32.mrb[0].mxu0
      %v675 = vadd.f32 %v555, %v674
      %v676 = vpop.f32.mrb[0].mxu0
      %677 = vmatprep.mubr.f32.mxu0 0.0
      %v678 = vand.u32 %v284, 4294901760
      %v679 = vsub.f32 %v284, %v678
      %680 = vmatmul.mubr.f32.gmra.mrb[0].mxu0 %v679
      %v681 = vpop.f32.mrb[0].mxu0
      %v682 = vadd.f32 %v561, %v681
      %v683 = vpop.f32.mrb[0].mxu0
      %684 = vdwg.mxu0
      %685 = vmatprep.subr.mxu0 0.0
      %v686 = vand.u32 %v205, 4294901760
      %687 = vmatpush1.msra.mxu0 %v686
      %688 = vmatprep.subr.mxu0 0.0
      %v689 = vand.u32 %v206, 4294901760
      %690 = vmatpush1.msra.mxu0 %v689
      %691 = vmatprep.subr.mxu0 0.0
      %v692 = vand.u32 %v210, 4294901760
      %693 = vmatpush1.msra.mxu0 %v692
      %694 = vmatprep.subr.mxu0 0.0
      %v695 = vand.u32 %v212, 4294901760
      %696 = vmatpush1.msra.mxu0 %v695
      %697 = vmatprep.subr.mxu0 0.0
      %v698 = vand.u32 %v216, 4294901760
      %699 = vmatpush1.msra.mxu0 %v698
      %700 = vmatprep.subr.mxu0 0.0
      %v701 = vand.u32 %v218, 4294901760
      %702 = vmatpush1.msra.mxu0 %v701
      %703 = vmatprep.subr.mxu0 0.0
      %v704 = vand.u32 %v222, 4294901760
      %705 = vmatpush1.msra.mxu0 %v704
      %706 = vmatprep.subr.mxu0 0.0
      %v707 = vand.u32 %v224, 4294901760
      %708 = vmatpush1.msra.mxu0 %v707
      %709 = vmatprep.subr.mxu0 0.0
      %v710 = vand.u32 %v228, 4294901760
      %711 = vmatpush1.msra.mxu0 %v710
      %712 = vmatprep.subr.mxu0 0.0
      %v713 = vand.u32 %v230, 4294901760
      %714 = vmatpush1.msra.mxu0 %v713
      %715 = vmatprep.subr.mxu0 0.0
      %v716 = vand.u32 %v234, 4294901760
      %717 = vmatpush1.msra.mxu0 %v716
      %718 = vmatprep.subr.mxu0 0.0
      %v719 = vand.u32 %v236, 4294901760
      %720 = vmatpush1.msra.mxu0 %v719
      %721 = vmatprep.subr.mxu0 0.0
      %v722 = vand.u32 %v240, 4294901760
      %723 = vmatpush1.msra.mxu0 %v722
      %724 = vmatprep.subr.mxu0 0.0
      %v725 = vand.u32 %v242, 4294901760
      %726 = vmatpush1.msra.mxu0 %v725
      %727 = vmatprep.subr.mxu0 0.0
      %728 = vmatpush1.msra.mxu0 0.0
      %729 = vmatprep.subr.mxu0 0.0
      %730 = vmatpush1.msra.mxu0 0.0
      %731 = vmatprep.subr.mxu0 0.0
      %732 = vmatpush1.msra.mxu0 0.0
      %733 = vmatprep.subr.mxu0 0.0
      %734 = vmatpush1.msra.mxu0 0.0
      %735 = vmatprep.subr.mxu0 0.0
      %736 = vmatpush1.msra.mxu0 0.0
      %737 = vmatprep.subr.mxu0 0.0
      %738 = vmatpush1.msra.mxu0 0.0
      %739 = vmatprep.subr.mxu0 0.0
      %740 = vmatpush1.msra.mxu0 0.0
      %741 = vmatprep.subr.mxu0 0.0
      %742 = vmatpush1.msra.mxu0 0.0
      %743 = vmatprep.subr.mxu0 0.0
      %744 = vmatpush1.msra.mxu0 0.0
      %745 = vmatprep.subr.mxu0 0.0
      %746 = vmatpush1.msra.mxu0 0.0
      %747 = vmatprep.subr.mxu0 0.0
      %748 = vmatpush1.msra.mxu0 0.0
      %749 = vmatprep.subr.mxu0 0.0
      %750 = vmatpush1.msra.mxu0 0.0
      %751 = vmatprep.subr.mxu0 0.0
      %752 = vmatpush1.msra.mxu0 0.0
      %753 = vmatprep.subr.mxu0 0.0
      %754 = vmatpush1.msra.mxu0 0.0
      %755 = vmatprep.subr.mxu0 0.0
      %756 = vmatpush1.msra.mxu0 0.0
      %757 = vmatprep.subr.mxu0 0.0
      %758 = vmatpush1.msra.mxu0 0.0
      %759 = vmatprep.subr.mxu0 0.0
      %760 = vmatpush1.msra.mxu0 0.0
      %761 = vmatprep.subr.mxu0 0.0
      %762 = vmatpush1.msra.mxu0 0.0
      %763 = vmatprep.mubr.f32.mxu0 0.0
      %v764 = vand.u32 %v275, 4294901760
      %v765 = vsub.f32 %v275, %v764
      %v766 = vand.u32 %v765, 4294901760
      %767 = vmatmul.mubr.f32.gmra.mrb[0].mxu0 %v766
      %v768 = vpop.f32.mrb[0].mxu0
      %v769 = vadd.f32 %v661, %v768
      %v770 = vpop.f32.mrb[0].mxu0
      %771 = vmatprep.mubr.f32.mxu0 0.0
      %v772 = vand.u32 %v278, 4294901760
      %v773 = vsub.f32 %v278, %v772
      %v774 = vand.u32 %v773, 4294901760
      %775 = vmatmul.mubr.f32.gmra.mrb[0].mxu0 %v774
      %v776 = vpop.f32.mrb[0].mxu0
      %v777 = vadd.f32 %v668, %v776
      %v778 = vpop.f32.mrb[0].mxu0
      %779 = vmatprep.mubr.f32.mxu0 0.0
      %v780 = vand.u32 %v281, 4294901760
      %v781 = vsub.f32 %v281, %v780
      %v782 = vand.u32 %v781, 4294901760
      %783 = vmatmul.mubr.f32.gmra.mrb[0].mxu0 %v782
      %v784 = vpop.f32.mrb[0].mxu0
      %v785 = vadd.f32 %v675, %v784
      %v786 = vpop.f32.mrb[0].mxu0
      %787 = vmatprep.mubr.f32.mxu0 0.0
      %v788 = vand.u32 %v284, 4294901760
      %v789 = vsub.f32 %v284, %v788
      %v790 = vand.u32 %v789, 4294901760
      %791 = vmatmul.mubr.f32.gmra.mrb[0].mxu0 %v790
      %v792 = vpop.f32.mrb[0].mxu0
      %v793 = vadd.f32 %v682, %v792
      %v794 = vpop.f32.mrb[0].mxu0
      %795 = vdwg.mxu0
      %796 = vmatprep.subr.mxu0 0.0
      %v797 = vand.u32 %v205, 4294901760
      %v798 = vsub.f32 %v205, %v797
      %v799 = vand.u32 %v798, 4294901760
      %800 = vmatpush1.msra.mxu0 %v799
      %801 = vmatprep.subr.mxu0 0.0
      %v802 = vand.u32 %v206, 4294901760
      %v803 = vsub.f32 %v206, %v802
      %v804 = vand.u32 %v803, 4294901760
      %805 = vmatpush1.msra.mxu0 %v804
      %806 = vmatprep.subr.mxu0 0.0
      %v807 = vand.u32 %v210, 4294901760
      %v808 = vsub.f32 %v210, %v807
      %v809 = vand.u32 %v808, 4294901760
      %810 = vmatpush1.msra.mxu0 %v809
      %811 = vmatprep.subr.mxu0 0.0
      %v812 = vand.u32 %v212, 4294901760
      %v813 = vsub.f32 %v212, %v812
      %v814 = vand.u32 %v813, 4294901760
      %815 = vmatpush1.msra.mxu0 %v814
      %816 = vmatprep.subr.mxu0 0.0
      %v817 = vand.u32 %v216, 4294901760
      %v818 = vsub.f32 %v216, %v817
      %v819 = vand.u32 %v818, 4294901760
      %820 = vmatpush1.msra.mxu0 %v819
      %821 = vmatprep.subr.mxu0 0.0
      %v822 = vand.u32 %v218, 4294901760
      %v823 = vsub.f32 %v218, %v822
      %v824 = vand.u32 %v823, 4294901760
      %825 = vmatpush1.msra.mxu0 %v824
      %826 = vmatprep.subr.mxu0 0.0
      %v827 = vand.u32 %v222, 4294901760
      %v828 = vsub.f32 %v222, %v827
      %v829 = vand.u32 %v828, 4294901760
      %830 = vmatpush1.msra.mxu0 %v829
      %831 = vmatprep.subr.mxu0 0.0
      %v832 = vand.u32 %v224, 4294901760
      %v833 = vsub.f32 %v224, %v832
      %v834 = vand.u32 %v833, 4294901760
      %835 = vmatpush1.msra.mxu0 %v834
      %836 = vmatprep.subr.mxu0 0.0
      %v837 = vand.u32 %v228, 4294901760
      %v838 = vsub.f32 %v228, %v837
      %v839 = vand.u32 %v838, 4294901760
      %840 = vmatpush1.msra.mxu0 %v839
      %841 = vmatprep.subr.mxu0 0.0
      %v842 = vand.u32 %v230, 4294901760
      %v843 = vsub.f32 %v230, %v842
      %v844 = vand.u32 %v843, 4294901760
      %845 = vmatpush1.msra.mxu0 %v844
      %846 = vmatprep.subr.mxu0 0.0
      %v847 = vand.u32 %v234, 4294901760
      %v848 = vsub.f32 %v234, %v847
      %v849 = vand.u32 %v848, 4294901760
      %850 = vmatpush1.msra.mxu0 %v849
      %851 = vmatprep.subr.mxu0 0.0
      %v852 = vand.u32 %v236, 4294901760
      %v853 = vsub.f32 %v236, %v852
      %v854 = vand.u32 %v853, 4294901760
      %855 = vmatpush1.msra.mxu0 %v854
      %856 = vmatprep.subr.mxu0 0.0
      %v857 = vand.u32 %v240, 4294901760
      %v858 = vsub.f32 %v240, %v857
      %v859 = vand.u32 %v858, 4294901760
      %860 = vmatpush1.msra.mxu0 %v859
      %861 = vmatprep.subr.mxu0 0.0
      %v862 = vand.u32 %v242, 4294901760
      %v863 = vsub.f32 %v242, %v862
      %v864 = vand.u32 %v863, 4294901760
      %865 = vmatpush1.msra.mxu0 %v864
      %866 = vmatprep.subr.mxu0 0.0
      %867 = vmatpush1.msra.mxu0 0.0
      %868 = vmatprep.subr.mxu0 0.0
      %869 = vmatpush1.msra.mxu0 0.0
      %870 = vmatprep.subr.mxu0 0.0
      %871 = vmatpush1.msra.mxu0 0.0
      %872 = vmatprep.subr.mxu0 0.0
      %873 = vmatpush1.msra.mxu0 0.0
      %874 = vmatprep.subr.mxu0 0.0
      %875 = vmatpush1.msra.mxu0 0.0
      %876 = vmatprep.subr.mxu0 0.0
      %877 = vmatpush1.msra.mxu0 0.0
      %878 = vmatprep.subr.mxu0 0.0
      %879 = vmatpush1.msra.mxu0 0.0
      %880 = vmatprep.subr.mxu0 0.0
      %881 = vmatpush1.msra.mxu0 0.0
      %882 = vmatprep.subr.mxu0 0.0
      %883 = vmatpush1.msra.mxu0 0.0
      %884 = vmatprep.subr.mxu0 0.0
      %885 = vmatpush1.msra.mxu0 0.0
      %886 = vmatprep.subr.mxu0 0.0
      %887 = vmatpush1.msra.mxu0 0.0
      %888 = vmatprep.subr.mxu0 0.0
      %889 = vmatpush1.msra.mxu0 0.0
      %890 = vmatprep.subr.mxu0 0.0
      %891 = vmatpush1.msra.mxu0 0.0
      %892 = vmatprep.subr.mxu0 0.0
      %893 = vmatpush1.msra.mxu0 0.0
      %894 = vmatprep.subr.mxu0 0.0
      %895 = vmatpush1.msra.mxu0 0.0
      %896 = vmatprep.subr.mxu0 0.0
      %897 = vmatpush1.msra.mxu0 0.0
      %898 = vmatprep.subr.mxu0 0.0
      %899 = vmatpush1.msra.mxu0 0.0
      %900 = vmatprep.subr.mxu0 0.0
      %901 = vmatpush1.msra.mxu0 0.0
      %902 = vmatprep.mubr.f32.mxu0 0.0
      %v903 = vand.u32 %v275, 4294901760
      %904 = vmatmul.mubr.f32.gmra.mrb[0].mxu0 %v903
      %v905 = vpop.f32.mrb[0].mxu0
      %v906 = vadd.f32 %v769, %v905
      %v907 = vpop.f32.mrb[0].mxu0
      %908 = vmatprep.mubr.f32.mxu0 0.0
      %v909 = vand.u32 %v278, 4294901760
      %910 = vmatmul.mubr.f32.gmra.mrb[0].mxu0 %v909
      %v911 = vpop.f32.mrb[0].mxu0
      %v912 = vadd.f32 %v777, %v911
      %v913 = vpop.f32.mrb[0].mxu0
      %914 = vmatprep.mubr.f32.mxu0 0.0
      %v915 = vand.u32 %v281, 4294901760
      %916 = vmatmul.mubr.f32.gmra.mrb[0].mxu0 %v915
      %v917 = vpop.f32.mrb[0].mxu0
      %v918 = vadd.f32 %v785, %v917
      %v919 = vpop.f32.mrb[0].mxu0
      %920 = vmatprep.mubr.f32.mxu0 0.0
      %v921 = vand.u32 %v284, 4294901760
      %922 = vmatmul.mubr.f32.gmra.mrb[0].mxu0 %v921
      %v923 = vpop.f32.mrb[0].mxu0
      %v924 = vadd.f32 %v793, %v923
      %v925 = vpop.f32.mrb[0].mxu0
      %926 = vdwg.mxu0
      %927 = vmatprep.subr.mxu0 0.0
      %v928 = vand.u32 %v205, 4294901760
      %929 = vmatpush1.msra.mxu0 %v928
      %930 = vmatprep.subr.mxu0 0.0
      %v931 = vand.u32 %v206, 4294901760
      %932 = vmatpush1.msra.mxu0 %v931
      %933 = vmatprep.subr.mxu0 0.0
      %v934 = vand.u32 %v210, 4294901760
      %935 = vmatpush1.msra.mxu0 %v934
      %936 = vmatprep.subr.mxu0 0.0
      %v937 = vand.u32 %v212, 4294901760
      %938 = vmatpush1.msra.mxu0 %v937
      %939 = vmatprep.subr.mxu0 0.0
      %v940 = vand.u32 %v216, 4294901760
      %941 = vmatpush1.msra.mxu0 %v940
      %942 = vmatprep.subr.mxu0 0.0
      %v943 = vand.u32 %v218, 4294901760
      %944 = vmatpush1.msra.mxu0 %v943
      %945 = vmatprep.subr.mxu0 0.0
      %v946 = vand.u32 %v222, 4294901760
      %947 = vmatpush1.msra.mxu0 %v946
      %948 = vmatprep.subr.mxu0 0.0
      %v949 = vand.u32 %v224, 4294901760
      %950 = vmatpush1.msra.mxu0 %v949
      %951 = vmatprep.subr.mxu0 0.0
      %v952 = vand.u32 %v228, 4294901760
      %953 = vmatpush1.msra.mxu0 %v952
      %954 = vmatprep.subr.mxu0 0.0
      %v955 = vand.u32 %v230, 4294901760
      %956 = vmatpush1.msra.mxu0 %v955
      %957 = vmatprep.subr.mxu0 0.0
      %v958 = vand.u32 %v234, 4294901760
      %959 = vmatpush1.msra.mxu0 %v958
      %960 = vmatprep.subr.mxu0 0.0
      %v961 = vand.u32 %v236, 4294901760
      %962 = vmatpush1.msra.mxu0 %v961
      %963 = vmatprep.subr.mxu0 0.0
      %v964 = vand.u32 %v240, 4294901760
      %965 = vmatpush1.msra.mxu0 %v964
      %966 = vmatprep.subr.mxu0 0.0
      %v967 = vand.u32 %v242, 4294901760
      %968 = vmatpush1.msra.mxu0 %v967
      %969 = vmatprep.subr.mxu0 0.0
      %970 = vmatpush1.msra.mxu0 0.0
      %971 = vmatprep.subr.mxu0 0.0
      %972 = vmatpush1.msra.mxu0 0.0
      %973 = vmatprep.subr.mxu0 0.0
      %974 = vmatpush1.msra.mxu0 0.0
      %975 = vmatprep.subr.mxu0 0.0
      %976 = vmatpush1.msra.mxu0 0.0
      %977 = vmatprep.subr.mxu0 0.0
      %978 = vmatpush1.msra.mxu0 0.0
      %979 = vmatprep.subr.mxu0 0.0
      %980 = vmatpush1.msra.mxu0 0.0
      %981 = vmatprep.subr.mxu0 0.0
      %982 = vmatpush1.msra.mxu0 0.0
      %983 = vmatprep.subr.mxu0 0.0
      %984 = vmatpush1.msra.mxu0 0.0
      %985 = vmatprep.subr.mxu0 0.0
      %986 = vmatpush1.msra.mxu0 0.0
      %987 = vmatprep.subr.mxu0 0.0
      %988 = vmatpush1.msra.mxu0 0.0
      %989 = vmatprep.subr.mxu0 0.0
      %990 = vmatpush1.msra.mxu0 0.0
      %991 = vmatprep.subr.mxu0 0.0
      %992 = vmatpush1.msra.mxu0 0.0
      %993 = vmatprep.subr.mxu0 0.0
      %994 = vmatpush1.msra.mxu0 0.0
      %995 = vmatprep.subr.mxu0 0.0
      %996 = vmatpush1.msra.mxu0 0.0
      %997 = vmatprep.subr.mxu0 0.0
      %998 = vmatpush1.msra.mxu0 0.0
      %999 = vmatprep.subr.mxu0 0.0
      %1000 = vmatpush1.msra.mxu0 0.0
      %1001 = vmatprep.subr.mxu0 0.0
      %1002 = vmatpush1.msra.mxu0 0.0
      %1003 = vmatprep.subr.mxu0 0.0
      %1004 = vmatpush1.msra.mxu0 0.0
      %1005 = vmatprep.mubr.f32.mxu0 0.0
      %v1006 = vand.u32 %v275, 4294901760
      %1007 = vmatmul.mubr.f32.gmra.mrb[0].mxu0 %v1006
      %v1008 = vpop.f32.mrb[0].mxu0
      %v1009 = vadd.f32 %v906, %v1008
      %v1010 = vpop.f32.mrb[0].mxu0
      %1011 = vmatprep.mubr.f32.mxu0 0.0
      %v1012 = vand.u32 %v278, 4294901760
      %1013 = vmatmul.mubr.f32.gmra.mrb[0].mxu0 %v1012
      %v1014 = vpop.f32.mrb[0].mxu0
      %v1015 = vadd.f32 %v912, %v1014
      %v1016 = vpop.f32.mrb[0].mxu0
      %1017 = vmatprep.mubr.f32.mxu0 0.0
      %v1018 = vand.u32 %v281, 4294901760
      %1019 = vmatmul.mubr.f32.gmra.mrb[0].mxu0 %v1018
      %v1020 = vpop.f32.mrb[0].mxu0
      %v1021 = vadd.f32 %v918, %v1020
      %v1022 = vpop.f32.mrb[0].mxu0
      %1023 = vmatprep.mubr.f32.mxu0 0.0
      %v1024 = vand.u32 %v284, 4294901760
      %1025 = vmatmul.mubr.f32.gmra.mrb[0].mxu0 %v1024
      %v1026 = vpop.f32.mrb[0].mxu0
      %v1027 = vadd.f32 %v924, %v1026
      %v1028 = vpop.f32.mrb[0].mxu0
      %1029 = vdwg.mxu0
      %vm1030 = vcmask 64512
      %1031 = vst.msk [vmem:[%s204] sm:$0xff] %vm1030, %v1009
      %1032 = vst.msk [vmem:[%s204 + $0x8] sm:$0xff] %vm1030, %v1015
      %1033 = vst.msk [vmem:[%s204 + $0x10] sm:$0xff] %vm1030, %v1021
      %1034 = vst.msk [vmem:[%s204 + $0x18] sm:$0xff] %vm1030, %v1027
      %p1035 = scmp.lt.s32.totalorder %s18, 1
      %s1036 = scalar_select %p1035, %s18, 1
      %p1037 = scmp.lt.s32.totalorder %s19, 0
      %s1038 = scalar_select %p1037, %s19, 0
      %s1039 = smul.addr %s1036, 4
      %s1040 = sadd.s32 %s1038, %s1039
      %s1041 = smul.addr %s1040, 8
      %s1042 = scalar_lea.vmem %s3, %s1041
      // Predicated region
      $region33: #{tpu_custom_call.1} parent=31 // pred_check
        %p1043 = pneg %p116
      $region34: #{tpu_custom_call.1} parent=31 // pred_check_branch
        %1045 = sbr.rel (%p1043) target = $region36
      $region35: #{tpu_custom_call.1} parent=31 // pred_region
        _
      $region36: #{tpu_custom_call.1} parent=31 // pred_fallthru
        _
    $region32: #{tpu_custom_call.1} parent=5 // pred_fallthru
      _
    %p1046 = scmp.le.s32.totalorder 2, %s9
    // Predicated region
    $region37: #{tpu_custom_call.1} parent=5 // pred_check
      %p1047 = pneg %p1046
    $region38: #{tpu_custom_call.1} parent=5 // pred_check_branch
      %1049 = sbr.rel (%p1047) target = $region40
    $region39: #{tpu_custom_call.1} parent=5 // pred_region
      %s1050 = ssub.s32 %s9, 2
      // Predicated region
      $region41: #{tpu_custom_call.1} parent=39 // pred_check
        %p1051 = pneg %p122
      $region42: #{tpu_custom_call.1} parent=39 // pred_check_branch
        %1053 = sbr.rel (%p1051) target = $region44
      $region43: #{tpu_custom_call.1} parent=39 // pred_region
        %p1054 = scmp.lt.s32.totalorder %s20, 1
        %s1055 = scalar_select %p1054, %s20, 1
        %p1056 = scmp.lt.s32.totalorder %s21, 0
        %s1057 = scalar_select %p1056, %s21, 0
        %s1058 = smul.addr %s1055, 4
        %s1059 = sadd.s32 %s1057, %s1058
        %s1060 = smul.addr %s1059, 8
        %s1061 = scalar_lea.vmem %s3, %s1060
      $region44: #{tpu_custom_call.1} parent=39 // pred_fallthru
        _
    $region40: #{tpu_custom_call.1} parent=5 // pred_fallthru
      _
  $region6: #{tpu_custom_call.1} parent=0 // loop_footer
    %s13 = sadd.s32 1, %s9
  $region7: #{tpu_custom_call.1} parent=0 // loop_footer_branch
    %8 = sbr.rel target = $region3
  $region8: #{tpu_custom_call.1} parent=0 // loop_exit
    _

</llo_original>
